<compile_context>
chip_gen: v7x
topology: tpu7x:2x2x1
jax: 0.10.0
libtpu: 0.0.40
codegen_flags: <defaults>
</compile_context>

<pallas_src>
import functools

import jax
import jax.numpy as jnp
from jax.experimental import pallas as pl
from jax.experimental.pallas import tpu as pltpu


def condnet_kernel(ct_ref, w1t_ref, b1_ref, w2_ref, b2_ref, o_ref):
    # ct_ref : (F, TB)  VMEM -- cond features on sublanes, batch on lanes
    # w1t_ref: (2, F)   VMEM -- resident Linear(F, 2) weight (PyTorch layout)
    # b1_ref : (2, 1)   VMEM -- Linear(F, 2) bias as a column (lane broadcast)
    # w2_ref : (2,)     SMEM -- Linear(2, 1) weight (flattened)
    # b2_ref : (1,)     SMEM -- Linear(2, 1) bias
    # o_ref  : (1, TB)  VMEM -- lane-dense output row
    h = jnp.dot(w1t_ref[...], ct_ref[...],
                preferred_element_type=jnp.float32)        # (2, TB) on the MXU
    ht = jnp.tanh(h + b1_ref[...])                         # single EUP pass, both rows
    # Second Linear(2, 1): K=2 -> two scalar*vector FMAs on the VPU (MXU idle).
    out = ht[0:1, :] * w2_ref[0] + ht[1:2, :] * w2_ref[1] + b2_ref[0]  # (1, TB)
    o_ref[...] = out.astype(o_ref.dtype)


def _pick_batch_tile(B, F, block_b):
    # Batch lives on the lane axis -> tile must be a multiple of 128.
    # Target ~4 MiB per (F, TB) f32 input tile so DMA time amortizes the
    # per-grid-step overhead; cap so double-buffering stays well inside VMEM.
    vmem_budget = 4 * 1024 * 1024
    tb = max(128, (vmem_budget // (4 * F)) // 128 * 128)
    tb = min(tb, 8192)
    if block_b is not None:
        tb = min(tb, max(128, (block_b // 128) * 128))
    tb = min(tb, pl.cdiv(B, 128) * 128)        # never pad more than one tile
    return tb


@functools.partial(jax.jit, static_argnames=("block_b",))
def condnet_forward(c, w1t, b1, w2, b2, *, block_b=None):
    """CondNet forward: tanh(c @ w1t.T + b1) @ w2 + b2. Returns (B, 1)."""
    B, F = c.shape
    tb = _pick_batch_tile(B, F, block_b)
    b_pad = pl.cdiv(B, tb) * tb
    grid = (b_pad // tb,)

    # Transposed, lane-padded view of the conditioning input: (F, b_pad).
    ct = jnp.pad(jnp.transpose(c), ((0, 0), (0, b_pad - B)))
    b1c = jnp.reshape(b1, (2, 1)).astype(jnp.float32)

    cost = pl.CostEstimate(
        flops=4 * b_pad * (F + 1),
        transcendentals=2 * b_pad,
        bytes_accessed=4 * (F * b_pad + b_pad + 2 * F + 5),
    )

    out_row = pl.pallas_call(
        condnet_kernel,
        out_shape=jax.ShapeDtypeStruct((1, b_pad), c.dtype),
        grid=grid,
        in_specs=[
            pl.BlockSpec((F, tb), lambda i: (0, i)),               # streamed input tiles
            pl.BlockSpec((2, F), lambda i: (0, 0)),                # resident layer-1 weight
            pl.BlockSpec((2, 1), lambda i: (0, 0)),                # layer-1 bias column
            pl.BlockSpec(memory_space=pltpu.MemorySpace.SMEM),     # w2 scalars
            pl.BlockSpec(memory_space=pltpu.MemorySpace.SMEM),     # b2 scalar
        ],
        out_specs=pl.BlockSpec((1, tb), lambda i: (0, i)),         # lane-dense output row
        compiler_params=pltpu.CompilerParams(
            dimension_semantics=("parallel",),                     # 2 TCs on v7x
            vmem_limit_bytes=32 * 1024 * 1024,                     # safe on v5e/v6e/v7x
        ),
        cost_estimate=cost,
    )(ct, w1t, b1c, w2, b2)

    # Drop batch padding and restore the PyTorch (B, 1) output shape.
    return out_row[0, :B][:, None]


def init_params(key, cond_features):
    # Deterministic synthetic init mirroring PyTorch nn.Linear (uniform fan-in).
    k1, k2, k3, k4 = jax.random.split(key, 4)
    bound1 = 1.0 / jnp.sqrt(float(cond_features))
    w1t = jax.random.uniform(k1, (2, cond_features), jnp.float32, -bound1, bound1)
    b1 = jax.random.uniform(k2, (2,), jnp.float32, -bound1, bound1)
    bound2 = 1.0 / jnp.sqrt(2.0)
    w2 = jax.random.uniform(k3, (2,), jnp.float32, -bound2, bound2)
    b2 = jax.random.uniform(k4, (1,), jnp.float32, -bound2, bound2)
    return w1t, b1, w2, b2


if __name__ == "__main__":
    key = jax.random.PRNGKey(0)
    k_in, k_par = jax.random.split(key)

    B, F = 8, 32                      # batch, cond_features
    c = jax.random.normal(k_in, (B, F), jnp.float32)
    w1t, b1, w2, b2 = init_params(k_par, F)

    out = condnet_forward(c, w1t, b1, w2, b2)
    out = jax.block_until_ready(out)

    # Reference check in plain JAX (PyTorch-equivalent forward).
    ref = jnp.tanh(c @ w1t.T + b1[None, :]) @ w2[:, None] + b2[None, :]
    assert out.shape == (B, 1)
    assert jnp.allclose(out, ref, atol=1e-5, rtol=1e-5)

    print("KERNEL_OK")
</pallas_src>

<mosaic_0001>
module attributes {stable_mosaic.version = 11 : i64} {
  func.func @condnet_kernel(%arg0: i32, %arg1: memref<32x128xf32, #tpu.memory_space<vmem>>, %arg2: memref<2x32xf32, #tpu.memory_space<vmem>>, %arg3: memref<2x1xf32, #tpu.memory_space<vmem>>, %arg4: memref<2xf32, #tpu.memory_space<smem>>, %arg5: memref<1xf32, #tpu.memory_space<smem>>, %arg6: memref<1x128xf32, #tpu.memory_space<vmem>>) attributes {dimension_semantics = [#tpu.dimension_semantics<parallel>], iteration_bounds = array<i64: 1>, scalar_prefetch = 0 : i64, scratch_operands = 0 : i64, tpu.core_type = #tpu.core_type<tc>, window_params = [{transform_indices = @transform_0, window_bounds = array<i64: 32, 128>}, {pipeline_mode = #tpu.pipeline_mode<synchronous>, transform_indices = @transform_1, window_bounds = array<i64: 2, 32>}, {pipeline_mode = #tpu.pipeline_mode<synchronous>, transform_indices = @transform_2, window_bounds = array<i64: 2, 1>}, {transform_indices = @transform_3, window_bounds = array<i64: 2>}, {transform_indices = @transform_4, window_bounds = array<i64: 1>}, {transform_indices = @transform_5, window_bounds = array<i64: 1, 128>}]} {
    %c0 = arith.constant 0 : index
    %c0_0 = arith.constant 0 : index
    %0 = vector.load %arg2[%c0, %c0_0] : memref<2x32xf32, #tpu.memory_space<vmem>>, vector<2x32xf32>
    %c0_1 = arith.constant 0 : index
    %c0_2 = arith.constant 0 : index
    %1 = vector.load %arg1[%c0_1, %c0_2] : memref<32x128xf32, #tpu.memory_space<vmem>>, vector<32x128xf32>
    %cst = arith.constant dense<0.000000e+00> : vector<2x128xf32>
    %2 = tpu.matmul %0, %1, %cst {dimension_numbers = #tpu.dot_dimension_numbers<[1], [0], [0], [1], [0, 0, 1, 1], [], []>} : vector<2x32xf32>, vector<32x128xf32>, vector<2x128xf32> -> vector<2x128xf32>
    %c0_3 = arith.constant 0 : index
    %c0_4 = arith.constant 0 : index
    %3 = vector.load %arg3[%c0_3, %c0_4] : memref<2x1xf32, #tpu.memory_space<vmem>>, vector<2x1xf32>
    %4 = vector.broadcast %3 : vector<2x1xf32> to vector<2x128xf32>
    %5 = arith.addf %2, %4 : vector<2x128xf32>
    %6 = math.tanh %5 : vector<2x128xf32>
    %7 = vector.extract_strided_slice %6 {offsets = [0, 0], sizes = [1, 128], strides = [1, 1]} : vector<2x128xf32> to vector<1x128xf32>
    %c0_5 = arith.constant 0 : index
    %8 = memref.load %arg4[%c0_5] : memref<2xf32, #tpu.memory_space<smem>>
    %9 = vector.broadcast %8 : f32 to vector<1x128xf32>
    %10 = arith.mulf %7, %9 : vector<1x128xf32>
    %11 = vector.extract_strided_slice %6 {offsets = [1, 0], sizes = [1, 128], strides = [1, 1]} : vector<2x128xf32> to vector<1x128xf32>
    %c1 = arith.constant 1 : index
    %12 = memref.load %arg4[%c1] : memref<2xf32, #tpu.memory_space<smem>>
    %13 = vector.broadcast %12 : f32 to vector<1x128xf32>
    %14 = arith.mulf %11, %13 : vector<1x128xf32>
    %15 = arith.addf %10, %14 : vector<1x128xf32>
    %c0_6 = arith.constant 0 : index
    %16 = memref.load %arg5[%c0_6] : memref<1xf32, #tpu.memory_space<smem>>
    %17 = vector.broadcast %16 : f32 to vector<1x128xf32>
    %18 = arith.addf %15, %17 : vector<1x128xf32>
    %c0_7 = arith.constant 0 : index
    %c0_8 = arith.constant 0 : index
    %19 = vector.load %arg6[%c0_7, %c0_8] : memref<1x128xf32, #tpu.memory_space<vmem>>, vector<1x128xf32>
    tpu.vector_store %arg6[%c0_7, %c0_8], %18 {strides = array<i32>} : memref<1x128xf32, #tpu.memory_space<vmem>>, vector<1x128xf32>,
    return
  }
  func.func @transform_0(%arg0: i32) -> (i32, i32) {
    %c0_i32 = arith.constant 0 : i32
    %c0_i32_0 = arith.constant 0 : i32
    return %c0_i32, %arg0 : i32, i32
  }
  func.func @transform_1(%arg0: i32) -> (i32, i32) {
    %c0_i32 = arith.constant 0 : i32
    %c0_i32_0 = arith.constant 0 : i32
    %c0_i32_1 = arith.constant 0 : i32
    return %c0_i32, %c0_i32_0 : i32, i32
  }
  func.func @transform_2(%arg0: i32) -> (i32, i32) {
    %c0_i32 = arith.constant 0 : i32
    %c0_i32_0 = arith.constant 0 : i32
    %c0_i32_1 = arith.constant 0 : i32
    return %c0_i32, %c0_i32_0 : i32, i32
  }
  func.func @transform_3(%arg0: i32) -> i32 {
    %c0_i32 = arith.constant 0 : i32
    %c0_i32_0 = arith.constant 0 : i32
    return %c0_i32 : i32
  }
  func.func @transform_4(%arg0: i32) -> i32 {
    %c0_i32 = arith.constant 0 : i32
    %c0_i32_0 = arith.constant 0 : i32
    return %c0_i32 : i32
  }
  func.func @transform_5(%arg0: i32) -> (i32, i32) {
    %c0_i32 = arith.constant 0 : i32
    %c0_i32_0 = arith.constant 0 : i32
    return %c0_i32, %arg0 : i32, i32
  }
}

</mosaic_0001>

<llo_original>
// kernel: condnet_forward.1
$region0: #{condnet_forward.1}
  #allocation0 [shape = 'u32[]', space=smem, size = 0x4, offset = 0x4, fixed_abs, tag = 'smem constant byte address 0x4 - core index']
  #allocation1 [shape = 'u32[144,128]{1,0:T(1,128)}', space=vmem, size = 0x12000, scoped, tag = 'internal scratch']
  #allocation2 [shape = 'f32[1]{0:T(128)S(6)}', space=smem, size = 0x200, scoped, tag = 'scoped memory for condnet_forward.1']
  %s0 = inlined_call_operand.vmem [shape: f32[32,128], index: 0, kind: input, shape index: {}]
  %s1 = inlined_call_operand.vmem [shape: f32[2,32], index: 1, kind: input, shape index: {}]
  %s2 = inlined_call_operand.vmem [shape: f32[2,1], index: 2, kind: input, shape index: {}]
  %s3 = inlined_call_operand.vmem [shape: f32[2], index: 3, kind: input, shape index: {}]
  %s4 = inlined_call_operand.<no memory space> [shape: f32[1], index: 4, kind: input, shape index: {}]
  %s5 = inlined_call_operand.vmem [shape: f32[1,128], index: 5, kind: output, shape index: {}]
  %s6 = sld [smem:[#allocation0]]
  $region34: #{condnet_forward.1} parent=0
    _
  %s8 = ssub.s32 1, %s6
  %s9 = scalar_select 0, %s8, %s6
  %10 = sst [smem:[#allocation2]] %s4
  $region1: #{condnet_forward.1} parent=0
    #allocation3 [shape = 'u8[512]{0}', space=smem, size = 0x200, scoped, tag = 'input window, operand 3, single buffered']
    #allocation4 [shape = 's32[1]{0}', space=sflag, size = 0x4, scoped, tag = 'scoped memory for condnet_forward.1']
    %11 = vsyncpa [#allocation4], 0
    // Predicated region
    $region2: #{condnet_forward.1} parent=1 // pred_check
      _
    $region3: #{condnet_forward.1} parent=1 // pred_check_branch
      %13 = sbr.rel (0) target = $region5
    $region4: #{condnet_forward.1} parent=1 // pred_region
      _
    $region5: #{condnet_forward.1} parent=1 // pred_fallthru
      _
    // Predicated region
    $region6: #{condnet_forward.1} parent=1 // pred_check
      _
    $region7: #{condnet_forward.1} parent=1 // pred_check_branch
      %15 = sbr.rel (0) target = $region9
    $region8: #{condnet_forward.1} parent=1 // pred_region
      _
    $region9: #{condnet_forward.1} parent=1 // pred_fallthru
      _
    // Predicated region
    $region10: #{condnet_forward.1} parent=1 // pred_check
      _
    $region11: #{condnet_forward.1} parent=1 // pred_check_branch
      %17 = sbr.rel (0) target = $region13
    $region12: #{condnet_forward.1} parent=1 // pred_region
      _
    $region13: #{condnet_forward.1} parent=1 // pred_fallthru
      _
    // Predicated region
    $region14: #{condnet_forward.1} parent=1 // pred_check
      _
    $region15: #{condnet_forward.1} parent=1 // pred_check_branch
      %19 = sbr.rel (0) target = $region17
    $region16: #{condnet_forward.1} parent=1 // pred_region
      %s21 = ssub.s32 16, 16
      %22 = vsyncadd [#allocation4], %s21
      %s24 = sshll.u32 %s3, 4
      %s25 = int_to_ptr.vmem [resolvable:$true] %s24
      %27 = dma.vmem_to_smem %s25, 16, [#allocation3], [#allocation4]
    $region17: #{condnet_forward.1} parent=1 // pred_fallthru
      _
    // Predicated region
    $region18: #{condnet_forward.1} parent=1 // pred_check
      _
    $region19: #{condnet_forward.1} parent=1 // pred_check_branch
      %29 = sbr.rel (0) target = $region21
    $region20: #{condnet_forward.1} parent=1 // pred_region
      _
    $region21: #{condnet_forward.1} parent=1 // pred_fallthru
      _
    // Predicated region
    $region22: #{condnet_forward.1} parent=1 // pred_check
      _
    $region23: #{condnet_forward.1} parent=1 // pred_check_branch
      %31 = sbr.rel (0) target = $region25
    $region24: #{condnet_forward.1} parent=1 // pred_region
      %32 = dma.done [#allocation4], 16
    $region25: #{condnet_forward.1} parent=1 // pred_fallthru
      _
    %33 = sfence
    %v34 = vld [vmem:[%s1] sm:$0x3]
    %v35 = vld [vmem:[%s0] sm:$0xff]
    %v36 = vld [vmem:[%s0 + $0x8] sm:$0xff]
    %v37 = vld [vmem:[%s0 + $0x10] sm:$0xff]
    %v38 = vld [vmem:[%s0 + $0x18] sm:$0xff]
    %v39 = vld [vmem:[%s2] sm:$0x3]
    %41 = vset.pattern.permute.xlu0 0
    %42 = vperm.xlu0 %41, %v39
    %v43 = vpop.permute.xlu0 %42
    %vm45 = vcmask 261120
    %v47 = vsel %vm45, %v34, 0
    %49 = vmatprep.subr.mxu0 0.0
    %50 = vmatpush1.msra.mxu0 %v35
    %51 = vmatprep.subr.mxu0 0.0
    %52 = vmatpush1.msra.mxu0 %v36
    %53 = vmatprep.subr.mxu0 0.0
    %54 = vmatpush1.msra.mxu0 %v37
    %55 = vmatprep.subr.mxu0 0.0
    %56 = vmatpush1.msra.mxu0 %v38
    %57 = vmatprep.subr.mxu0 0.0
    %58 = vmatpush1.msra.mxu0 0.0
    %59 = vmatprep.subr.mxu0 0.0
    %60 = vmatpush1.msra.mxu0 0.0
    %61 = vmatprep.subr.mxu0 0.0
    %62 = vmatpush1.msra.mxu0 0.0
    %63 = vmatprep.subr.mxu0 0.0
    %64 = vmatpush1.msra.mxu0 0.0
    %65 = vmatprep.subr.mxu0 0.0
    %66 = vmatpush1.msra.mxu0 0.0
    %67 = vmatprep.subr.mxu0 0.0
    %68 = vmatpush1.msra.mxu0 0.0
    %69 = vmatprep.subr.mxu0 0.0
    %70 = vmatpush1.msra.mxu0 0.0
    %71 = vmatprep.subr.mxu0 0.0
    %72 = vmatpush1.msra.mxu0 0.0
    %73 = vmatprep.subr.mxu0 0.0
    %74 = vmatpush1.msra.mxu0 0.0
    %75 = vmatprep.subr.mxu0 0.0
    %76 = vmatpush1.msra.mxu0 0.0
    %77 = vmatprep.subr.mxu0 0.0
    %78 = vmatpush1.msra.mxu0 0.0
    %79 = vmatprep.subr.mxu0 0.0
    %80 = vmatpush1.msra.mxu0 0.0
    %81 = vmatprep.subr.mxu0 0.0
    %82 = vmatpush1.msra.mxu0 0.0
    %83 = vmatprep.subr.mxu0 0.0
    %84 = vmatpush1.msra.mxu0 0.0
    %85 = vmatprep.subr.mxu0 0.0
    %86 = vmatpush1.msra.mxu0 0.0
    %87 = vmatprep.subr.mxu0 0.0
    %88 = vmatpush1.msra.mxu0 0.0
    %89 = vmatprep.subr.mxu0 0.0
    %90 = vmatpush1.msra.mxu0 0.0
    %91 = vmatprep.subr.mxu0 0.0
    %92 = vmatpush1.msra.mxu0 0.0
    %93 = vmatprep.subr.mxu0 0.0
    %94 = vmatpush1.msra.mxu0 0.0
    %95 = vmatprep.subr.mxu0 0.0
    %96 = vmatpush1.msra.mxu0 0.0
    %97 = vmatprep.subr.mxu0 0.0
    %98 = vmatpush1.msra.mxu0 0.0
    %99 = vmatprep.subr.mxu0 0.0
    %100 = vmatpush1.msra.mxu0 0.0
    %101 = vmatprep.subr.mxu0 0.0
    %102 = vmatpush1.msra.mxu0 0.0
    %103 = vmatprep.subr.mxu0 0.0
    %104 = vmatpush1.msra.mxu0 0.0
    %105 = vmatprep.subr.mxu0 0.0
    %106 = vmatpush1.msra.mxu0 0.0
    %107 = vmatprep.subr.mxu0 0.0
    %108 = vmatpush1.msra.mxu0 0.0
    %109 = vmatprep.subr.mxu0 0.0
    %110 = vmatpush1.msra.mxu0 0.0
    %111 = vmatprep.subr.mxu0 0.0
    %112 = vmatpush1.msra.mxu0 0.0
    %113 = vmatprep.mubr.f32.mxu0 0.0
    %114 = vmatmul.mubr.f32.gmra.mrb[0].mxu0 %v47
    %v115 = vpop.f32.mrb[0].mxu0
    %v116 = vadd.f32 %v43, %v115
    %v117 = vpop.f32.mrb[0].mxu0
    %118 = vdwg.mxu0
    %v119 = vtanh.pop %v116
    %s120 = sld [smem:[#allocation3]]
    %v121 = vstv %s120
    %v122 = vmul.f32 %v119, %v121
    %s123 = sld [smem:[#allocation3 + $0x1]]
    %v124 = vstv %s123
    %v125 = vmul.f32 %v119, %v124
    %v127 = vrot.slane %v125, 1
    %v129 = vadd.f32 %v122, %v127
    %s130 = sld [smem:[#allocation2]]
    %v131 = vstv %s130
    %v132 = vadd.f32 %v129, %v131
    %133 = vst [vmem:[%s5] sm:$0x1] %v132
    // Predicated region
    $region26: #{condnet_forward.1} parent=1 // pred_check
      _
    $region27: #{condnet_forward.1} parent=1 // pred_check_branch
      %135 = sbr.rel (0) target = $region29
    $region28: #{condnet_forward.1} parent=1 // pred_region
      _
    $region29: #{condnet_forward.1} parent=1 // pred_fallthru
      _
    // Predicated region
    $region30: #{condnet_forward.1} parent=1 // pred_check
      _
    $region31: #{condnet_forward.1} parent=1 // pred_check_branch
      %137 = sbr.rel (0) target = $region33
    $region32: #{condnet_forward.1} parent=1 // pred_region
      _
    $region33: #{condnet_forward.1} parent=1 // pred_fallthru
      _
    %138 = vsyncpa [#allocation4], 1

</llo_original>
